<compile_context>
chip_gen: v7x
topology: tpu7x:2x2x1
jax: 0.10.0
libtpu: 0.0.40
codegen_flags: <defaults>
</compile_context>

<pallas_src>
import functools

import jax
import jax.numpy as jnp
from jax.experimental import pallas as pl
from jax.experimental.pallas import tpu as pltpu


def _round_up(x, m):
    return (x + m - 1) // m * m


# ---------------------------------------------------------------------------
# Fused kernel: packed conv (all filter sizes) + ReLU + max-pool + FC + sigmoid
# ---------------------------------------------------------------------------
def fused_cnn_kernel(x_ref, w_ref, thr_ref, cb_ref, fw_ref, fb_ref, o_ref,
                     *, k_max, l_pad, bt):
    # x_ref   : (bt*l_pad, D)       bf16  batch-major flattened embeddings
    # w_ref   : (k_max, D, F_pad)   bf16  packed conv filter banks (taps)
    # thr_ref : (1, F_pad)          i32   valid iff t < thr[f]  (0 for pads)
    # cb_ref  : (1, F_pad)          f32   packed conv biases (0 for pads)
    # fw_ref  : (1, F_pad)          f32   FC weight row       (0 for pads)
    # fb_ref  : (1, 1)              f32   FC bias
    # o_ref   : (bt, 1)             f32   sigmoid(logits)
    x = x_ref[...]
    f_pad = w_ref.shape[2]
    m_rows = bt * l_pad

    # Conv1d as a sum over taps of row-shifted matmuls:
    #   acc[r, f] = sum_j x[r + j, :] @ W[j][:, f]
    # (shift applied to the f32 output with an XLU roll; wrapped /
    #  cross-sample rows land only on positions the mask removes).
    # TODO(synk): once memory-bound issues dominate again, consider packing
    # taps along N (single dot, N = k_max*F_pad) or rolling the bf16 input.
    acc = jnp.dot(x, w_ref[0], preferred_element_type=jnp.float32)
    for j in range(1, k_max):                     # k_max is small & static
        y = jnp.dot(x, w_ref[j], preferred_element_type=jnp.float32)
        acc = acc + pltpu.roll(y, shift=m_rows - j, axis=0)  # out[r] = y[r+j]

    # In-kernel time-validity mask: position t is valid for column f iff
    # t < thr[f].  A few iota/compare VPU ops replace the old DMA'd mask.
    t_idx = jax.lax.broadcasted_iota(jnp.int32, (l_pad, f_pad), 0)
    neg = jnp.where(t_idx < thr_ref[...], 0.0, -1e30).astype(jnp.float32)

    acc3 = acc.reshape(bt, l_pad, f_pad) + neg[None, :, :]
    pooled = jnp.max(acc3, axis=1)                           # (bt, F_pad)
    pooled = jnp.maximum(pooled + cb_ref[...], 0.0)          # bias + ReLU

    # TODO(synk): nn.Dropout(p=0.25) is identity at inference; training-mode
    # dropout (pltpu.prng_*) is not implemented here.

    # FC (out_features=1) as VPU multiply + lane reduce, then sigmoid.
    # TODO(synk): a lane-dense (1, bt) output layout would remove the masked
    # vst; negligible bytes here, so the simple (bt, 1) store is kept.
    logits = jnp.sum(pooled * fw_ref[...], axis=-1, keepdims=True) + fb_ref[...]
    o_ref[...] = jax.nn.sigmoid(logits)


# ---------------------------------------------------------------------------
# Forward pass wrapper
# ---------------------------------------------------------------------------
def cnn_forward(input_ids, params, *, batch_tile=None):
    """input_ids: (B, L) int32 -> (B, 1) f32 probabilities.

    batch_tile=None auto-sizes toward a ~2 MB bf16 x block per grid step
    (>= 512 M rows), capped at half the padded batch so the grid has >= 2
    steps (both v7x TensorCores get work).  Pass an explicit multiple of 8
    to override.
    """
    filter_sizes = params["filter_sizes"]
    num_filters = params["num_filters"]
    k_max = max(filter_sizes)
    emb = params["embedding_bf16"]                  # bf16 table, renormed once
    D = emb.shape[1]
    w = params["conv_w_packed_bf16"]                # (k_max, D, f_pad) bf16
    f_pad = w.shape[2]
    f_tot = int(sum(num_filters))

    B, L = input_ids.shape
    l_pad = _round_up(L, 8)                         # no extra tap padding

    if batch_tile is None:
        target_rows = max(512, (2 << 20) // max(D * 2, 1))   # ~2 MB bf16 slab
        bt_auto = _round_up(max(target_rows // l_pad, 1), 8)
        half_batch = _round_up(max(B // 2, 1), 8)
        batch_tile = max(8, min(bt_auto, half_batch))
    bt = batch_tile
    assert bt % 8 == 0, "batch_tile must be a multiple of 8"
    b_pad = _round_up(max(B, bt), bt)

    # Pad ids (batch + time) with index 0, then gather DIRECTLY in bf16.
    # Padded rows never feed a valid conv position and padded samples are
    # sliced off, so the pad value is harmless either way.
    # TODO(synk): for large vocab / long L, fuse this gather into the kernel
    # via PrefetchScalarGridSpec (ids as scalar prefetch) + pl.Element row
    # indexing instead of materializing (b_pad, l_pad, D) in HBM.
    ids = jnp.pad(input_ids, ((0, b_pad - B), (0, l_pad - L)))
    x2d = jnp.take(emb, ids, axis=0).reshape(b_pad * l_pad, D)   # bf16

    # Per-column validity threshold: t valid iff t < L - k + 1.  Pad columns
    # get 0 (always masked) -> pooled = relu(-1e30 + 0) = 0, FC weight 0.
    # Note: if L < k for some group, that whole group is masked and pools to
    # 0 (PyTorch Conv1d would raise instead).
    thr_list = sum([[L - k + 1] * f for k, f in zip(filter_sizes, num_filters)],
                   [])
    thr_list += [0] * (f_pad - f_tot)
    thresh = jnp.asarray(thr_list, jnp.int32).reshape(1, f_pad)

    cb = params["conv_b_packed"]                    # (1, f_pad) f32
    fw = params["fc_w_row"]                         # (1, f_pad) f32
    fb = params["fc_b"]                             # (1, 1)     f32

    # Explicit scoped-VMEM limit (v5e default is only 16 MiB); keep it well
    # under v7x's 64 MiB physical VMEM.
    x_block_bytes = bt * l_pad * D * 2
    acc_bytes = bt * l_pad * f_pad * 4
    vmem_need = (3 * x_block_bytes + k_max * D * f_pad * 2 + 3 * acc_bytes
                 + (2 << 20))
    vmem_limit = int(min(max(vmem_need, 16 << 20), 48 << 20))

    kernel = functools.partial(fused_cnn_kernel, k_max=k_max, l_pad=l_pad,
                               bt=bt)
    out = pl.pallas_call(
        kernel,
        out_shape=jax.ShapeDtypeStruct((b_pad, 1), jnp.float32),
        grid=(b_pad // bt,),
        in_specs=[
            pl.BlockSpec((bt * l_pad, D), lambda i: (i, 0)),
            pl.BlockSpec((k_max, D, f_pad), lambda i: (0, 0, 0)),
            pl.BlockSpec((1, f_pad), lambda i: (0, 0)),
            pl.BlockSpec((1, f_pad), lambda i: (0, 0)),
            pl.BlockSpec((1, f_pad), lambda i: (0, 0)),
            pl.BlockSpec((1, 1), lambda i: (0, 0)),
        ],
        out_specs=pl.BlockSpec((bt, 1), lambda i: (i, 0)),
        compiler_params=pltpu.CompilerParams(
            dimension_semantics=("parallel",),      # 2 v7x TCs shard the grid
            vmem_limit_bytes=vmem_limit),
    )(x2d, w, thresh, cb, fw, fb)
    return out[:B]


# ---------------------------------------------------------------------------
# Parameters (PyTorch-equivalent init, packed & pre-cast for the fused kernel)
# ---------------------------------------------------------------------------
def init_params(key, vocab_size, embed_dim, filter_sizes, num_filters):
    n = len(filter_sizes)
    keys = jax.random.split(key, 2 * n + 3)
    emb = 0.5 * jax.random.normal(keys[0], (vocab_size, embed_dim), jnp.float32)
    emb = emb.at[0].set(0.0)                        # padding_idx=0
    # nn.Embedding(max_norm=5.0): renorm hoisted out of the per-forward path.
    # TODO(synk): torch renorms in place only the rows touched per batch; a
    # one-time whole-table renorm is forward-equivalent (inference only).
    norms = jnp.linalg.norm(emb, axis=1, keepdims=True)
    emb = emb * jnp.minimum(1.0, 5.0 / jnp.maximum(norms, 1e-7))

    k_max = max(filter_sizes)
    f_tot = int(sum(num_filters))
    f_pad = _round_up(max(f_tot, 128), 128)         # lane-dense N for the MXU
    w_packed = jnp.zeros((k_max, embed_dim, f_pad), jnp.float32)
    b_packed = jnp.zeros((1, f_pad), jnp.float32)
    fc_w_row = jnp.zeros((1, f_pad), jnp.float32)
    off = 0
    for i, (k, f) in enumerate(zip(filter_sizes, num_filters)):
        # PyTorch Conv1d weight layout is (F, D, k); pack tap j as (D, F).
        w_t = 0.1 * jax.random.normal(keys[1 + 2 * i], (f, embed_dim, k),
                                      jnp.float32)
        b_t = 0.1 * jax.random.normal(keys[2 + 2 * i], (f,), jnp.float32)
        for j in range(k):
            w_packed = w_packed.at[j, :, off:off + f].set(w_t[:, :, j].T)
        b_packed = b_packed.at[0, off:off + f].set(b_t)
        off += f

    fc_w = 0.1 * jax.random.normal(keys[-2], (f_tot, 1), jnp.float32)
    fc_b = 0.1 * jax.random.normal(keys[-1], (1, 1), jnp.float32)
    fc_w_row = fc_w_row.at[0, :f_tot].set(fc_w[:, 0])
    return {
        "embedding": emb,                           # f32 (reference)
        "embedding_bf16": emb.astype(jnp.bfloat16), # cast once, gathered bf16
        "conv_w_packed": w_packed,                  # f32 (reference)
        "conv_w_packed_bf16": w_packed.astype(jnp.bfloat16),
        "conv_b_packed": b_packed,
        "fc_w_row": fc_w_row,                       # (1, f_pad), pads are 0
        "fc_b": fc_b,
        "filter_sizes": tuple(filter_sizes),
        "num_filters": tuple(num_filters),
    }


# Pure-JAX (f32) reference of the module's forward, for a tolerance check.
def reference_forward(input_ids, params):
    fs, nf = params["filter_sizes"], params["num_filters"]
    f_tot = int(sum(nf))
    x = jnp.take(params["embedding"], input_ids, axis=0).astype(jnp.float32)
    w, cb = params["conv_w_packed"], params["conv_b_packed"][0]
    pooled, off = [], 0
    for k, f in zip(fs, nf):
        l_out = x.shape[1] - k + 1
        acc = jnp.zeros((x.shape[0], l_out, f), jnp.float32)
        for j in range(k):
            acc = acc + jnp.einsum("bld,df->blf", x[:, j:j + l_out, :],
                                   w[j, :, off:off + f])
        acc = jnp.maximum(acc + cb[off:off + f], 0.0)
        pooled.append(jnp.max(acc, axis=1))
        off += f
    feats = jnp.concatenate(pooled, axis=1)
    logits = feats @ params["fc_w_row"][:, :f_tot].T + params["fc_b"]
    return jax.nn.sigmoid(logits)


if __name__ == "__main__":
    # Small shapes consistent with the module's forward.
    B, L = 16, 16
    vocab_size, embed_dim = 50, 32
    filter_sizes = [3, 4, 5]
    num_filters = [16, 16, 16]

    key = jax.random.PRNGKey(0)
    k_ids, k_params = jax.random.split(key)
    input_ids = jax.random.randint(k_ids, (B, L), 0, vocab_size, jnp.int32)
    params = init_params(k_params, vocab_size, embed_dim, filter_sizes,
                         num_filters)

    out = cnn_forward(input_ids, params)            # auto batch_tile -> grid=2
    out = jax.block_until_ready(out)
    assert out.shape == (B, 1) and out.dtype == jnp.float32
    assert bool(jnp.all(jnp.isfinite(out)))
    assert bool(jnp.all((out >= 0.0) & (out <= 1.0)))

    ref = reference_forward(input_ids, params)
    err = float(jnp.max(jnp.abs(out - ref)))
    assert err < 2e-2, f"mismatch vs f32 reference: {err}"
    print("KERNEL_OK")
</pallas_src>

<mosaic_0001>
module attributes {stable_mosaic.version = 11 : i64} {
  func.func @fused_cnn_kernel(%arg0: i32, %arg1: memref<128x32xbf16, #tpu.memory_space<vmem>>, %arg2: memref<5x32x128xbf16, #tpu.memory_space<vmem>>, %arg3: memref<1x128xi32, #tpu.memory_space<vmem>>, %arg4: memref<1x128xf32, #tpu.memory_space<vmem>>, %arg5: memref<1x128xf32, #tpu.memory_space<vmem>>, %arg6: memref<1x1xf32, #tpu.memory_space<vmem>>, %arg7: memref<8x1xf32, #tpu.memory_space<vmem>>) attributes {dimension_semantics = [#tpu.dimension_semantics<parallel>], iteration_bounds = array<i64: 2>, scalar_prefetch = 0 : i64, scratch_operands = 0 : i64, tpu.core_type = #tpu.core_type<tc>, window_params = [{transform_indices = @transform_0, window_bounds = array<i64: 128, 32>}, {pipeline_mode = #tpu.pipeline_mode<synchronous>, transform_indices = @transform_1, window_bounds = array<i64: 5, 32, 128>}, {pipeline_mode = #tpu.pipeline_mode<synchronous>, transform_indices = @transform_2, window_bounds = array<i64: 1, 128>}, {pipeline_mode = #tpu.pipeline_mode<synchronous>, transform_indices = @transform_3, window_bounds = array<i64: 1, 128>}, {pipeline_mode = #tpu.pipeline_mode<synchronous>, transform_indices = @transform_4, window_bounds = array<i64: 1, 128>}, {pipeline_mode = #tpu.pipeline_mode<synchronous>, transform_indices = @transform_5, window_bounds = array<i64: 1, 1>}, {transform_indices = @transform_6, window_bounds = array<i64: 8, 1>}]} {
    %c0 = arith.constant 0 : index
    %c0_0 = arith.constant 0 : index
    %0 = vector.load %arg1[%c0, %c0_0] : memref<128x32xbf16, #tpu.memory_space<vmem>>, vector<128x32xbf16>
    %c0_1 = arith.constant 0 : index
    %c0_2 = arith.constant 0 : index
    %c0_3 = arith.constant 0 : index
    %1 = vector.load %arg2[%c0_1, %c0_2, %c0_3] : memref<5x32x128xbf16, #tpu.memory_space<vmem>>, vector<1x32x128xbf16>
    %2 = vector.shape_cast %1 : vector<1x32x128xbf16> to vector<32x128xbf16>
    %cst = arith.constant dense<0.000000e+00> : vector<128x128xf32>
    %3 = tpu.matmul %0, %2, %cst {dimension_numbers = #tpu.dot_dimension_numbers<[1], [0], [0], [1], [0, 0, 1, 1], [], []>} : vector<128x32xbf16>, vector<32x128xbf16>, vector<128x128xf32> -> vector<128x128xf32>
    %c1 = arith.constant 1 : index
    %c0_4 = arith.constant 0 : index
    %c0_5 = arith.constant 0 : index
    %4 = vector.load %arg2[%c1, %c0_4, %c0_5] : memref<5x32x128xbf16, #tpu.memory_space<vmem>>, vector<1x32x128xbf16>
    %5 = vector.shape_cast %4 : vector<1x32x128xbf16> to vector<32x128xbf16>
    %cst_6 = arith.constant dense<0.000000e+00> : vector<128x128xf32>
    %6 = tpu.matmul %0, %5, %cst_6 {dimension_numbers = #tpu.dot_dimension_numbers<[1], [0], [0], [1], [0, 0, 1, 1], [], []>} : vector<128x32xbf16>, vector<32x128xbf16>, vector<128x128xf32> -> vector<128x128xf32>
    %c127_i32 = arith.constant 127 : i32
    %7 = tpu.dynamic_rotate %6 by %c127_i32 dim 0 : vector<128x128xf32>, i32 -> vector<128x128xf32>
    %8 = arith.addf %3, %7 : vector<128x128xf32>
    %c2 = arith.constant 2 : index
    %c0_7 = arith.constant 0 : index
    %c0_8 = arith.constant 0 : index
    %9 = vector.load %arg2[%c2, %c0_7, %c0_8] : memref<5x32x128xbf16, #tpu.memory_space<vmem>>, vector<1x32x128xbf16>
    %10 = vector.shape_cast %9 : vector<1x32x128xbf16> to vector<32x128xbf16>
    %cst_9 = arith.constant dense<0.000000e+00> : vector<128x128xf32>
    %11 = tpu.matmul %0, %10, %cst_9 {dimension_numbers = #tpu.dot_dimension_numbers<[1], [0], [0], [1], [0, 0, 1, 1], [], []>} : vector<128x32xbf16>, vector<32x128xbf16>, vector<128x128xf32> -> vector<128x128xf32>
    %c126_i32 = arith.constant 126 : i32
    %12 = tpu.dynamic_rotate %11 by %c126_i32 dim 0 : vector<128x128xf32>, i32 -> vector<128x128xf32>
    %13 = arith.addf %8, %12 : vector<128x128xf32>
    %c3 = arith.constant 3 : index
    %c0_10 = arith.constant 0 : index
    %c0_11 = arith.constant 0 : index
    %14 = vector.load %arg2[%c3, %c0_10, %c0_11] : memref<5x32x128xbf16, #tpu.memory_space<vmem>>, vector<1x32x128xbf16>
    %15 = vector.shape_cast %14 : vector<1x32x128xbf16> to vector<32x128xbf16>
    %cst_12 = arith.constant dense<0.000000e+00> : vector<128x128xf32>
    %16 = tpu.matmul %0, %15, %cst_12 {dimension_numbers = #tpu.dot_dimension_numbers<[1], [0], [0], [1], [0, 0, 1, 1], [], []>} : vector<128x32xbf16>, vector<32x128xbf16>, vector<128x128xf32> -> vector<128x128xf32>
    %c125_i32 = arith.constant 125 : i32
    %17 = tpu.dynamic_rotate %16 by %c125_i32 dim 0 : vector<128x128xf32>, i32 -> vector<128x128xf32>
    %18 = arith.addf %13, %17 : vector<128x128xf32>
    %c4 = arith.constant 4 : index
    %c0_13 = arith.constant 0 : index
    %c0_14 = arith.constant 0 : index
    %19 = vector.load %arg2[%c4, %c0_13, %c0_14] : memref<5x32x128xbf16, #tpu.memory_space<vmem>>, vector<1x32x128xbf16>
    %20 = vector.shape_cast %19 : vector<1x32x128xbf16> to vector<32x128xbf16>
    %cst_15 = arith.constant dense<0.000000e+00> : vector<128x128xf32>
    %21 = tpu.matmul %0, %20, %cst_15 {dimension_numbers = #tpu.dot_dimension_numbers<[1], [0], [0], [1], [0, 0, 1, 1], [], []>} : vector<128x32xbf16>, vector<32x128xbf16>, vector<128x128xf32> -> vector<128x128xf32>
    %c124_i32 = arith.constant 124 : i32
    %22 = tpu.dynamic_rotate %21 by %c124_i32 dim 0 : vector<128x128xf32>, i32 -> vector<128x128xf32>
    %23 = arith.addf %18, %22 : vector<128x128xf32>
    %24 = tpu.iota {dimensions = array<i32: 0>} : vector<16x128xi32>
    %c0_16 = arith.constant 0 : index
    %c0_17 = arith.constant 0 : index
    %25 = vector.load %arg3[%c0_16, %c0_17] : memref<1x128xi32, #tpu.memory_space<vmem>>, vector<1x128xi32>
    %26 = vector.broadcast %25 : vector<1x128xi32> to vector<16x128xi32>
    %27 = arith.cmpi slt, %24, %26 : vector<16x128xi32>
    %cst_18 = arith.constant 0.000000e+00 : f32
    %cst_19 = arith.constant -1.000000e+30 : f32
    %28 = vector.broadcast %cst_18 : f32 to vector<16x128xf32>
    %29 = vector.broadcast %cst_19 : f32 to vector<16x128xf32>
    %30 = arith.select %27, %28, %29 : vector<16x128xi1>, vector<16x128xf32>
    %31 = vector.shape_cast %23 : vector<128x128xf32> to vector<8x16x128xf32>
    %32 = vector.shape_cast %30 : vector<16x128xf32> to vector<1x16x128xf32>
    %33 = vector.broadcast %32 : vector<1x16x128xf32> to vector<8x16x128xf32>
    %34 = arith.addf %31, %33 : vector<8x16x128xf32>
    %cst_20 = arith.constant dense<0xFF800000> : vector<8x128xf32>
    %35 = vector.multi_reduction <maximumf>, %34, %cst_20 [1] : vector<8x16x128xf32> to vector<8x128xf32>
    %c0_21 = arith.constant 0 : index
    %c0_22 = arith.constant 0 : index
    %36 = vector.load %arg4[%c0_21, %c0_22] : memref<1x128xf32, #tpu.memory_space<vmem>>, vector<1x128xf32>
    %37 = vector.broadcast %36 : vector<1x128xf32> to vector<8x128xf32>
    %38 = arith.addf %35, %37 : vector<8x128xf32>
    %cst_23 = arith.constant 0.000000e+00 : f32
    %39 = vector.broadcast %cst_23 : f32 to vector<8x128xf32>
    %40 = arith.maximumf %38, %39 : vector<8x128xf32>
    %c0_24 = arith.constant 0 : index
    %c0_25 = arith.constant 0 : index
    %41 = vector.load %arg5[%c0_24, %c0_25] : memref<1x128xf32, #tpu.memory_space<vmem>>, vector<1x128xf32>
    %42 = vector.broadcast %41 : vector<1x128xf32> to vector<8x128xf32>
    %43 = arith.mulf %40, %42 : vector<8x128xf32>
    %cst_26 = arith.constant dense<0.000000e+00> : vector<8xf32>
    %44 = vector.multi_reduction <add>, %43, %cst_26 [1] : vector<8x128xf32> to vector<8xf32>
    %45 = vector.shape_cast %44 : vector<8xf32> to vector<8x1xf32>
    %c0_27 = arith.constant 0 : index
    %c0_28 = arith.constant 0 : index
    %46 = vector.load %arg6[%c0_27, %c0_28] : memref<1x1xf32, #tpu.memory_space<vmem>>, vector<1x1xf32>
    %47 = vector.broadcast %46 : vector<1x1xf32> to vector<8x1xf32>
    %48 = arith.addf %45, %47 : vector<8x1xf32>
    %49 = arith.negf %48 : vector<8x1xf32>
    %50 = math.exp %49 : vector<8x1xf32>
    %cst_29 = arith.constant 1.000000e+00 : f32
    %51 = vector.broadcast %cst_29 : f32 to vector<8x1xf32>
    %52 = arith.addf %51, %50 : vector<8x1xf32>
    %53 = arith.divf %51, %52 : vector<8x1xf32>
    %c0_30 = arith.constant 0 : index
    %c0_31 = arith.constant 0 : index
    %54 = vector.load %arg7[%c0_30, %c0_31] : memref<8x1xf32, #tpu.memory_space<vmem>>, vector<8x1xf32>
    tpu.vector_store %arg7[%c0_30, %c0_31], %53 {strides = array<i32>} : memref<8x1xf32, #tpu.memory_space<vmem>>, vector<8x1xf32>,
    return
  }
  func.func @transform_0(%arg0: i32) -> (i32, i32) {
    %c0_i32 = arith.constant 0 : i32
    %c0_i32_0 = arith.constant 0 : i32
    return %arg0, %c0_i32 : i32, i32
  }
  func.func @transform_1(%arg0: i32) -> (i32, i32, i32) {
    %c0_i32 = arith.constant 0 : i32
    %c0_i32_0 = arith.constant 0 : i32
    %c0_i32_1 = arith.constant 0 : i32
    %c0_i32_2 = arith.constant 0 : i32
    return %c0_i32, %c0_i32_0, %c0_i32_1 : i32, i32, i32
  }
  func.func @transform_2(%arg0: i32) -> (i32, i32) {
    %c0_i32 = arith.constant 0 : i32
    %c0_i32_0 = arith.constant 0 : i32
    %c0_i32_1 = arith.constant 0 : i32
    return %c0_i32, %c0_i32_0 : i32, i32
  }
  func.func @transform_3(%arg0: i32) -> (i32, i32) {
    %c0_i32 = arith.constant 0 : i32
    %c0_i32_0 = arith.constant 0 : i32
    %c0_i32_1 = arith.constant 0 : i32
    return %c0_i32, %c0_i32_0 : i32, i32
  }
  func.func @transform_4(%arg0: i32) -> (i32, i32) {
    %c0_i32 = arith.constant 0 : i32
    %c0_i32_0 = arith.constant 0 : i32
    %c0_i32_1 = arith.constant 0 : i32
    return %c0_i32, %c0_i32_0 : i32, i32
  }
  func.func @transform_5(%arg0: i32) -> (i32, i32) {
    %c0_i32 = arith.constant 0 : i32
    %c0_i32_0 = arith.constant 0 : i32
    %c0_i32_1 = arith.constant 0 : i32
    return %c0_i32, %c0_i32_0 : i32, i32
  }
  func.func @transform_6(%arg0: i32) -> (i32, i32) {
    %c0_i32 = arith.constant 0 : i32
    %c0_i32_0 = arith.constant 0 : i32
    return %arg0, %c0_i32 : i32, i32
  }
}

</mosaic_0001>

<llo_original>
// kernel: tpu_custom_call.1
$region0: #{tpu_custom_call.1}
  #allocation0 [shape = 'u32[]', space=smem, size = 0x4, offset = 0x4, fixed_abs, tag = 'smem constant byte address 0x4 - core index']
  #allocation1 [shape = 'u32[144,128]{1,0:T(1,128)}', space=vmem, size = 0x12000, scoped, tag = 'internal scratch']
  #allocation2 [shape = 'f32[1,1]{1,0:T(1,128)S(1)}', space=vmem, size = 0x200, scoped, tag = 'scoped memory for tpu_custom_call.1']
  %s0 = inlined_call_operand.vmem [shape: bf16[256,32], index: 0, kind: input, shape index: {}]
  %s1 = inlined_call_operand.vmem [shape: bf16[5,32,128], index: 1, kind: input, shape index: {}]
  %s2 = inlined_call_operand.vmem [shape: s32[1,128], index: 2, kind: input, shape index: {}]
  %s3 = inlined_call_operand.vmem [shape: f32[1,128], index: 3, kind: input, shape index: {}]
  %s4 = inlined_call_operand.vmem [shape: f32[1,128], index: 4, kind: input, shape index: {}]
  %s5 = inlined_call_operand.<no memory space> [shape: f32[1,1], index: 5, kind: input, shape index: {}]
  %s6 = inlined_call_operand.vmem [shape: f32[16,1], index: 6, kind: output, shape index: {}]
  %s7 = sld [smem:[#allocation0]]
  $region57: #{tpu_custom_call.1} parent=0
    _
  %s9 = ssub.s32 1, %s7
  %s10 = scalar_select 0, %s9, %s7
  %v11 = vstv %s5
  %12 = vst [vmem:[#allocation2] sm:$0x1] %v11
  loop: start=0, step=1, limit=4
  $region2: #{tpu_custom_call.1} parent=0 // loop_pre_header
    _
  $region3: #{tpu_custom_call.1} parent=0 // loop_header
    %s14 = sphi 0, %s18
    %p15 = scmp.ge.s32.totalorder %s14, 4
    %s24 = sphi 0, %s26
    %s27 = sphi 0, %s24
    %s28 = sphi 0, %s27
    %s44 = sphi 0, %s28
    %s48 = sphi 0, %s48
    %s50 = sphi 0, %s48
    %s51 = sphi 0, %s50
    %s65 = sphi 0, %s51
    %s69 = sphi 0, %s69
    %s71 = sphi 0, %s69
    %s72 = sphi 0, %s71
    %s86 = sphi 0, %s72
    %s90 = sphi 0, %s90
    %s92 = sphi 0, %s90
    %s93 = sphi 0, %s92
    %s107 = sphi 0, %s93
    %s111 = sphi 0, %s111
    %s113 = sphi 0, %s111
    %s114 = sphi 0, %s113
    %s128 = sphi 0, %s114
    %s132 = sphi 0, %s132
    %s134 = sphi 0, %s132
    %s135 = sphi 0, %s134
    %s149 = sphi 0, %s135
    %s155 = sphi 0, %s157
    %s158 = sphi 0, %s155
    %s159 = sphi 0, %s158
    %s175 = sphi 0, %s159
  $region4: #{tpu_custom_call.1} parent=0 // loop_header_branch
    %17 = sbr.rel (%p15) target = $region8
  $region5: #{tpu_custom_call.1} parent=0 // loop_body
    %s19 = ssub.s32 %s14, 1
    %s20 = ssub.s32 %s14, 2
    %s21 = sadd.s32 %s14, 1
    %s22 = ssub.s32 %s14, %s21
    %p23 = scmp.eq.s32.totalorder %s22, 0
    %s25 = sadd.s32 %s24, 1
    %s26 = scalar_select %p23, %s24, %s25
    %p29 = pneg %p23
    %p30 = scmp.eq.s32.totalorder %s14, 1
    %p31 = por %p29, %p30
    %p32 = scmp.ne.s32.totalorder %s24, %s27
    %p33 = scmp.eq.s32.totalorder %s14, 0
    %p34 = por %p32, %p33
    %p35 = scmp.ne.s32.totalorder %s24, %s27
    %p36 = scmp.eq.s32.totalorder %s19, 1
    %p37 = por %p35, %p36
    %p38 = scmp.ne.s32.totalorder %s27, %s28
    %p39 = scmp.eq.s32.totalorder %s19, 0
    %p40 = por %p38, %p39
    %p41 = scmp.ne.s32.totalorder %s27, %s28
    %p42 = scmp.eq.s32.totalorder %s20, 1
    %p43 = por %p41, %p42
    %p45 = scmp.ne.s32.totalorder %s28, %s44
    %p46 = scmp.eq.s32.totalorder %s20, 0
    %p47 = por %p45, %p46
    %s49 = sadd.s32 %s48, 1
    %p52 = scmp.eq.s32.totalorder %s14, 1
    %p53 = scmp.ne.s32.totalorder %s48, %s50
    %p54 = scmp.eq.s32.totalorder %s14, 0
    %p55 = por %p53, %p54
    %p56 = scmp.ne.s32.totalorder %s48, %s50
    %p57 = scmp.eq.s32.totalorder %s19, 1
    %p58 = por %p56, %p57
    %p59 = scmp.ne.s32.totalorder %s50, %s51
    %p60 = scmp.eq.s32.totalorder %s19, 0
    %p61 = por %p59, %p60
    %p62 = scmp.ne.s32.totalorder %s50, %s51
    %p63 = scmp.eq.s32.totalorder %s20, 1
    %p64 = por %p62, %p63
    %p66 = scmp.ne.s32.totalorder %s51, %s65
    %p67 = scmp.eq.s32.totalorder %s20, 0
    %p68 = por %p66, %p67
    %s70 = sadd.s32 %s69, 1
    %p73 = scmp.eq.s32.totalorder %s14, 1
    %p74 = scmp.ne.s32.totalorder %s69, %s71
    %p75 = scmp.eq.s32.totalorder %s14, 0
    %p76 = por %p74, %p75
    %p77 = scmp.ne.s32.totalorder %s69, %s71
    %p78 = scmp.eq.s32.totalorder %s19, 1
    %p79 = por %p77, %p78
    %p80 = scmp.ne.s32.totalorder %s71, %s72
    %p81 = scmp.eq.s32.totalorder %s19, 0
    %p82 = por %p80, %p81
    %p83 = scmp.ne.s32.totalorder %s71, %s72
    %p84 = scmp.eq.s32.totalorder %s20, 1
    %p85 = por %p83, %p84
    %p87 = scmp.ne.s32.totalorder %s72, %s86
    %p88 = scmp.eq.s32.totalorder %s20, 0
    %p89 = por %p87, %p88
    %s91 = sadd.s32 %s90, 1
    %p94 = scmp.eq.s32.totalorder %s14, 1
    %p95 = scmp.ne.s32.totalorder %s90, %s92
    %p96 = scmp.eq.s32.totalorder %s14, 0
    %p97 = por %p95, %p96
    %p98 = scmp.ne.s32.totalorder %s90, %s92
    %p99 = scmp.eq.s32.totalorder %s19, 1
    %p100 = por %p98, %p99
    %p101 = scmp.ne.s32.totalorder %s92, %s93
    %p102 = scmp.eq.s32.totalorder %s19, 0
    %p103 = por %p101, %p102
    %p104 = scmp.ne.s32.totalorder %s92, %s93
    %p105 = scmp.eq.s32.totalorder %s20, 1
    %p106 = por %p104, %p105
    %p108 = scmp.ne.s32.totalorder %s93, %s107
    %p109 = scmp.eq.s32.totalorder %s20, 0
    %p110 = por %p108, %p109
    %s112 = sadd.s32 %s111, 1
    %p115 = scmp.eq.s32.totalorder %s14, 1
    %p116 = scmp.ne.s32.totalorder %s111, %s113
    %p117 = scmp.eq.s32.totalorder %s14, 0
    %p118 = por %p116, %p117
    %p119 = scmp.ne.s32.totalorder %s111, %s113
    %p120 = scmp.eq.s32.totalorder %s19, 1
    %p121 = por %p119, %p120
    %p122 = scmp.ne.s32.totalorder %s113, %s114
    %p123 = scmp.eq.s32.totalorder %s19, 0
    %p124 = por %p122, %p123
    %p125 = scmp.ne.s32.totalorder %s113, %s114
    %p126 = scmp.eq.s32.totalorder %s20, 1
    %p127 = por %p125, %p126
    %p129 = scmp.ne.s32.totalorder %s114, %s128
    %p130 = scmp.eq.s32.totalorder %s20, 0
    %p131 = por %p129, %p130
    %s133 = sadd.s32 %s132, 1
    %p136 = scmp.eq.s32.totalorder %s14, 1
    %p137 = scmp.ne.s32.totalorder %s132, %s134
    %p138 = scmp.eq.s32.totalorder %s14, 0
    %p139 = por %p137, %p138
    %p140 = scmp.ne.s32.totalorder %s132, %s134
    %p141 = scmp.eq.s32.totalorder %s19, 1
    %p142 = por %p140, %p141
    %p143 = scmp.ne.s32.totalorder %s134, %s135
    %p144 = scmp.eq.s32.totalorder %s19, 0
    %p145 = por %p143, %p144
    %p146 = scmp.ne.s32.totalorder %s134, %s135
    %p147 = scmp.eq.s32.totalorder %s20, 1
    %p148 = por %p146, %p147
    %p150 = scmp.ne.s32.totalorder %s135, %s149
    %p151 = scmp.eq.s32.totalorder %s20, 0
    %p152 = por %p150, %p151
    %s153 = ssub.s32 %s14, %s21
    %p154 = scmp.eq.s32.totalorder %s153, 0
    %s156 = sadd.s32 %s155, 1
    %s157 = scalar_select %p154, %s155, %s156
    %p160 = pneg %p154
    %p161 = scmp.eq.s32.totalorder %s14, 1
    %p162 = por %p160, %p161
    %p163 = scmp.ne.s32.totalorder %s155, %s158
    %p164 = scmp.eq.s32.totalorder %s14, 0
    %p165 = por %p163, %p164
    %p166 = scmp.ne.s32.totalorder %s155, %s158
    %p167 = scmp.eq.s32.totalorder %s19, 1
    %p168 = por %p166, %p167
    %p169 = scmp.ne.s32.totalorder %s158, %s159
    %p170 = scmp.eq.s32.totalorder %s19, 0
    %p171 = por %p169, %p170
    %p172 = scmp.ne.s32.totalorder %s158, %s159
    %p173 = scmp.eq.s32.totalorder %s20, 1
    %p174 = por %p172, %p173
    %p176 = scmp.ne.s32.totalorder %s159, %s175
    %p177 = scmp.eq.s32.totalorder %s20, 0
    %p178 = por %p176, %p177
    %p179 = scmp.le.s32.totalorder 1, %s14
    %p180 = scmp.lt.s32.totalorder %s14, 3
    %p181 = pnand %p179, %p180
    %p182 = pneg %p181
    // Predicated region
    $region9: #{tpu_custom_call.1} parent=5 // pred_check
      _
    $region10: #{tpu_custom_call.1} parent=5 // pred_check_branch
      %184 = sbr.rel (%p181) target = $region12
    $region11: #{tpu_custom_call.1} parent=5 // pred_region
      %s185 = ssub.s32 %s14, 1
      // Predicated region
      $region13: #{tpu_custom_call.1} parent=11 // pred_check
        %p186 = pneg %p61
      $region14: #{tpu_custom_call.1} parent=11 // pred_check_branch
        %188 = sbr.rel (%p186) target = $region16
      $region15: #{tpu_custom_call.1} parent=11 // pred_region
        _
      $region16: #{tpu_custom_call.1} parent=11 // pred_fallthru
        _
      // Predicated region
      $region17: #{tpu_custom_call.1} parent=11 // pred_check
        %p189 = pneg %p82
      $region18: #{tpu_custom_call.1} parent=11 // pred_check_branch
        %191 = sbr.rel (%p189) target = $region20
      $region19: #{tpu_custom_call.1} parent=11 // pred_region
        _
      $region20: #{tpu_custom_call.1} parent=11 // pred_fallthru
        _
      // Predicated region
      $region21: #{tpu_custom_call.1} parent=11 // pred_check
        %p192 = pneg %p103
      $region22: #{tpu_custom_call.1} parent=11 // pred_check_branch
        %194 = sbr.rel (%p192) target = $region24
      $region23: #{tpu_custom_call.1} parent=11 // pred_region
        _
      $region24: #{tpu_custom_call.1} parent=11 // pred_fallthru
        _
      // Predicated region
      $region25: #{tpu_custom_call.1} parent=11 // pred_check
        %p195 = pneg %p124
      $region26: #{tpu_custom_call.1} parent=11 // pred_check_branch
        %197 = sbr.rel (%p195) target = $region28
      $region27: #{tpu_custom_call.1} parent=11 // pred_region
        _
      $region28: #{tpu_custom_call.1} parent=11 // pred_fallthru
        _
      // Predicated region
      $region29: #{tpu_custom_call.1} parent=11 // pred_check
        %p198 = pneg %p145
      $region30: #{tpu_custom_call.1} parent=11 // pred_check_branch
        %200 = sbr.rel (%p198) target = $region32
      $region31: #{tpu_custom_call.1} parent=11 // pred_region
        _
      $region32: #{tpu_custom_call.1} parent=11 // pred_fallthru
        _
    $region12: #{tpu_custom_call.1} parent=5 // pred_fallthru
      _
    %p201 = scmp.lt.s32.totalorder %s14, 2
    // Predicated region
    $region33: #{tpu_custom_call.1} parent=5 // pred_check
      %p202 = pneg %p201
    $region34: #{tpu_custom_call.1} parent=5 // pred_check_branch
      %204 = sbr.rel (%p202) target = $region36
    $region35: #{tpu_custom_call.1} parent=5 // pred_region
      // Predicated region
      $region37: #{tpu_custom_call.1} parent=35 // pred_check
        %p205 = pneg %p34
      $region38: #{tpu_custom_call.1} parent=35 // pred_check_branch
        %207 = sbr.rel (%p205) target = $region40
      $region39: #{tpu_custom_call.1} parent=35 // pred_region
        %s208 = smul.u32 16, %s14
        %p209 = scmp.lt.s32.totalorder %s208, 31
        %s210 = scalar_select %p209, %s208, 31
        %s211 = smul.addr %s210, 4
        %s212 = scalar_lea.vmem %s0, %s211
        %s213 = smul.u32 16, %s14
      $region40: #{tpu_custom_call.1} parent=35 // pred_fallthru
        _
    $region36: #{tpu_custom_call.1} parent=5 // pred_fallthru
      _
    %p214 = scmp.le.s32.totalorder 1, %s14
    %p215 = scmp.lt.s32.totalorder %s14, 3
    %p216 = pnand %p214, %p215
    %p217 = pneg %p216
    // Predicated region
    $region41: #{tpu_custom_call.1} parent=5 // pred_check
      _
    $region42: #{tpu_custom_call.1} parent=5 // pred_check_branch
      %219 = sbr.rel (%p216) target = $region44
    $region43: #{tpu_custom_call.1} parent=5 // pred_region
      %s220 = ssub.s32 %s14, 1
      %s221 = smul.u32 16, %s19
      %p222 = scmp.lt.s32.totalorder %s221, 31
      %s223 = scalar_select %p222, %s221, 31
      %s224 = smul.addr %s223, 4
      %s225 = scalar_lea.vmem %s0, %s224
      %p226 = pneg %p40
      %p227 = pneg %p37
      %p228 = pneg %p61
      %p229 = pneg %p58
      %p230 = pneg %p82
      %p231 = pneg %p79
      %p232 = pneg %p103
      %p233 = pneg %p100
      %p234 = pneg %p124
      %p235 = pneg %p121
      %p236 = pneg %p145
      %p237 = pneg %p142
      %p238 = pneg %p171
      %p239 = pneg %p168
      %p240 = scmp.lt.s32.totalorder %s19, 1
      %s241 = scalar_select %p240, %s19, 1
      %s242 = smul.addr %s241, 8
      %s243 = scalar_lea.vmem %s6, %s242
      %s244 = smul.u32 16, %s19
      %p245 = scmp.lt.s32.totalorder %s244, 31
      %s246 = scalar_select %p245, %s244, 31
      %s247 = smul.addr %s246, 4
      %s248 = scalar_lea.vmem %s0, %s247
      %s249 = smul.u32 16, %s19
      %p250 = scmp.lt.s32.totalorder %s19, 1
      %s251 = scalar_select %p250, %s19, 1
      %s252 = smul.addr %s251, 8
      %s253 = scalar_lea.vmem %s6, %s252
      %v255 = vld [vmem:[%s248] sm:$0xf]
      %v256 = vld [vmem:[%s248 + $0x4] sm:$0xf]
      %v257 = vld [vmem:[%s248 + $0x8] sm:$0xf]
      %v258 = vld [vmem:[%s248 + $0xc] sm:$0xf]
      %v259 = vld [vmem:[%s248 + $0x10] sm:$0xf]
      %v260 = vld [vmem:[%s248 + $0x14] sm:$0xf]
      %v261 = vld [vmem:[%s248 + $0x18] sm:$0xf]
      %v262 = vld [vmem:[%s248 + $0x1c] sm:$0xf]
      %v263 = vld [vmem:[%s248 + $0x20] sm:$0xf]
      %v264 = vld [vmem:[%s248 + $0x24] sm:$0xf]
      %v265 = vld [vmem:[%s248 + $0x28] sm:$0xf]
      %v266 = vld [vmem:[%s248 + $0x2c] sm:$0xf]
      %v267 = vld [vmem:[%s248 + $0x30] sm:$0xf]
      %v268 = vld [vmem:[%s248 + $0x34] sm:$0xf]
      %v269 = vld [vmem:[%s248 + $0x38] sm:$0xf]
      %v270 = vld [vmem:[%s248 + $0x3c] sm:$0xf]
      %v271 = vld [vmem:[%s1] sm:$0xf]
      %v272 = vld [vmem:[%s1 + $0x4] sm:$0xf]
      %v273 = vld [vmem:[%s1 + $0x8] sm:$0xf]
      %v274 = vld [vmem:[%s1 + $0xc] sm:$0xf]
      %s275 = scalar_lea.vmem %s1, 16
      %v276 = vld [vmem:[%s275] sm:$0xf]
      %v277 = vld [vmem:[%s275 + $0x4] sm:$0xf]
      %v278 = vld [vmem:[%s275 + $0x8] sm:$0xf]
      %v279 = vld [vmem:[%s275 + $0xc] sm:$0xf]
      %v296 = vunpack.c.l.b16 %v255
      %v297 = vunpack.c.l.b16 %v256
      %v298 = vunpack.c.l.b16 %v257
      %v299 = vunpack.c.l.b16 %v258
      %v300 = vunpack.c.l.b16 %v259
      %v301 = vunpack.c.l.b16 %v260
      %v302 = vunpack.c.l.b16 %v261
      %v303 = vunpack.c.l.b16 %v262
      %v304 = vunpack.c.l.b16 %v263
      %v305 = vunpack.c.l.b16 %v264
      %v306 = vunpack.c.l.b16 %v265
      %v307 = vunpack.c.l.b16 %v266
      %v308 = vunpack.c.l.b16 %v267
      %v309 = vunpack.c.l.b16 %v268
      %v310 = vunpack.c.l.b16 %v269
      %v311 = vunpack.c.l.b16 %v270
      %v312 = vpack.c.b16 %v297, %v296
      %v313 = vpack.c.b16 %v299, %v298
      %v314 = vpack.c.b16 %v301, %v300
      %v315 = vpack.c.b16 %v303, %v302
      %v316 = vpack.c.b16 %v305, %v304
      %v317 = vpack.c.b16 %v307, %v306
      %v318 = vpack.c.b16 %v309, %v308
      %v319 = vpack.c.b16 %v311, %v310
      %v324 = vunpack.c.l.b16 %v276
      %v325 = vunpack.c.l.b16 %v277
      %v326 = vunpack.c.l.b16 %v278
      %v327 = vunpack.c.l.b16 %v279
      %v328 = vpack.c.b16 %v325, %v324
      %v329 = vpack.c.b16 %v327, %v326
      %vm332 = vcmask 261120
      %v334 = vsel %vm332, %v312, 0
      %v337 = vsel %vm332, %v313, 0
      %v340 = vsel %vm332, %v314, 0
      %v343 = vsel %vm332, %v315, 0
      %v346 = vsel %vm332, %v316, 0
      %v349 = vsel %vm332, %v317, 0
      %v352 = vsel %vm332, %v318, 0
      %v355 = vsel %vm332, %v319, 0
      %357 = vmatprep.subr.bf16.mxu0 0
      %358 = vmatpush1.bf16.msra.mxu0 %v328
      %359 = vmatprep.subr.bf16.mxu0 0
      %360 = vmatpush1.bf16.msra.mxu0 %v329
      %361 = vmatprep.subr.bf16.mxu0 0
      %362 = vmatpush1.bf16.msra.mxu0 0
      %363 = vmatprep.subr.bf16.mxu0 0
      %364 = vmatpush1.bf16.msra.mxu0 0
      %365 = vmatprep.subr.bf16.mxu0 0
      %366 = vmatpush1.bf16.msra.mxu0 0
      %367 = vmatprep.subr.bf16.mxu0 0
      %368 = vmatpush1.bf16.msra.mxu0 0
      %369 = vmatprep.subr.bf16.mxu0 0
      %370 = vmatpush1.bf16.msra.mxu0 0
      %371 = vmatprep.subr.bf16.mxu0 0
      %372 = vmatpush1.bf16.msra.mxu0 0
      %373 = vmatprep.subr.bf16.mxu0 0
      %374 = vmatpush1.bf16.msra.mxu0 0
      %375 = vmatprep.subr.bf16.mxu0 0
      %376 = vmatpush1.bf16.msra.mxu0 0
      %377 = vmatprep.subr.bf16.mxu0 0
      %378 = vmatpush1.bf16.msra.mxu0 0
      %379 = vmatprep.subr.bf16.mxu0 0
      %380 = vmatpush1.bf16.msra.mxu0 0
      %381 = vmatprep.subr.bf16.mxu0 0
      %382 = vmatpush1.bf16.msra.mxu0 0
      %383 = vmatprep.subr.bf16.mxu0 0
      %384 = vmatpush1.bf16.msra.mxu0 0
      %385 = vmatprep.subr.bf16.mxu0 0
      %386 = vmatpush1.bf16.msra.mxu0 0
      %387 = vmatprep.subr.bf16.mxu0 0
      %388 = vmatpush1.bf16.msra.mxu0 0
      %389 = vmatprep.mubr.bf16.mxu0 0
      %390 = vmatmul.mubr.bf16.gmra.mrb[0].mxu0 %v334
      %v391 = vpop.f32.mrb[0].mxu0
      %v392 = vadd.f32 0.0, %v391
      %v393 = vpop.f32.mrb[0].mxu0
      %v394 = vpop.f32.mrb[0].mxu0
      %v395 = vadd.f32 0.0, %v394
      %v396 = vpop.f32.mrb[0].mxu0
      %397 = vmatprep.mubr.bf16.mxu0 0
      %398 = vmatmul.mubr.bf16.gmra.mrb[0].mxu0 %v337
      %v399 = vpop.f32.mrb[0].mxu0
      %v400 = vadd.f32 0.0, %v399
      %v401 = vpop.f32.mrb[0].mxu0
      %v402 = vpop.f32.mrb[0].mxu0
      %v403 = vadd.f32 0.0, %v402
      %v404 = vpop.f32.mrb[0].mxu0
      %405 = vmatprep.mubr.bf16.mxu0 0
      %406 = vmatmul.mubr.bf16.gmra.mrb[0].mxu0 %v340
      %v407 = vpop.f32.mrb[0].mxu0
      %v408 = vadd.f32 0.0, %v407
      %v409 = vpop.f32.mrb[0].mxu0
      %v410 = vpop.f32.mrb[0].mxu0
      %v411 = vadd.f32 0.0, %v410
      %v412 = vpop.f32.mrb[0].mxu0
      %413 = vmatprep.mubr.bf16.mxu0 0
      %414 = vmatmul.mubr.bf16.gmra.mrb[0].mxu0 %v343
      %v415 = vpop.f32.mrb[0].mxu0
      %v416 = vadd.f32 0.0, %v415
      %v417 = vpop.f32.mrb[0].mxu0
      %v418 = vpop.f32.mrb[0].mxu0
      %v419 = vadd.f32 0.0, %v418
      %v420 = vpop.f32.mrb[0].mxu0
      %421 = vmatprep.mubr.bf16.mxu0 0
      %422 = vmatmul.mubr.bf16.gmra.mrb[0].mxu0 %v346
      %v423 = vpop.f32.mrb[0].mxu0
      %v424 = vadd.f32 0.0, %v423
      %v425 = vpop.f32.mrb[0].mxu0
      %v426 = vpop.f32.mrb[0].mxu0
      %v427 = vadd.f32 0.0, %v426
      %v428 = vpop.f32.mrb[0].mxu0
      %429 = vmatprep.mubr.bf16.mxu0 0
      %430 = vmatmul.mubr.bf16.gmra.mrb[0].mxu0 %v349
      %v431 = vpop.f32.mrb[0].mxu0
      %v432 = vadd.f32 0.0, %v431
      %v433 = vpop.f32.mrb[0].mxu0
      %v434 = vpop.f32.mrb[0].mxu0
      %v435 = vadd.f32 0.0, %v434
      %v436 = vpop.f32.mrb[0].mxu0
      %437 = vmatprep.mubr.bf16.mxu0 0
      %438 = vmatmul.mubr.bf16.gmra.mrb[0].mxu0 %v352
      %v439 = vpop.f32.mrb[0].mxu0
      %v440 = vadd.f32 0.0, %v439
      %v441 = vpop.f32.mrb[0].mxu0
      %v442 = vpop.f32.mrb[0].mxu0
      %v443 = vadd.f32 0.0, %v442
      %v444 = vpop.f32.mrb[0].mxu0
      %445 = vmatprep.mubr.bf16.mxu0 0
      %446 = vmatmul.mubr.bf16.gmra.mrb[0].mxu0 %v355
      %v447 = vpop.f32.mrb[0].mxu0
      %v448 = vadd.f32 0.0, %v447
      %v449 = vpop.f32.mrb[0].mxu0
      %v450 = vpop.f32.mrb[0].mxu0
      %v451 = vadd.f32 0.0, %v450
      %v452 = vpop.f32.mrb[0].mxu0
      %453 = vdwg.mxu0
      %v454 = vrot.slane %v392, 1
      %v455 = vrot.slane %v395, 1
      %v456 = vrot.slane %v400, 1
      %v457 = vrot.slane %v403, 1
      %v458 = vrot.slane %v408, 1
      %v459 = vrot.slane %v411, 1
      %v460 = vrot.slane %v416, 1
      %v461 = vrot.slane %v419, 1
      %v462 = vrot.slane %v424, 1
      %v463 = vrot.slane %v427, 1
      %v464 = vrot.slane %v432, 1
      %v465 = vrot.slane %v435, 1
      %v466 = vrot.slane %v440, 1
      %v467 = vrot.slane %v443, 1
      %v468 = vrot.slane %v448, 1
      %v469 = vrot.slane %v451, 1
      %v470 = vlaneseq
      %v471 = vshrl.u32 %v470, 7
      %vm472 = vcmp.lt.s32.totalorder %v471, 7
      %v473 = vsel %vm472, %v468, %v469
      %v474 = vsel %vm472, %v467, %v468
      %v475 = vsel %vm472, %v466, %v467
      %v476 = vsel %vm472, %v465, %v466
      %v477 = vsel %vm472, %v464, %v465
      %v478 = vsel %vm472, %v463, %v464
      %v479 = vsel %vm472, %v462, %v463
      %v480 = vsel %vm472, %v461, %v462
      %v481 = vsel %vm472, %v460, %v461
      %v482 = vsel %vm472, %v459, %v460
      %v483 = vsel %vm472, %v458, %v459
      %v484 = vsel %vm472, %v457, %v458
      %v485 = vsel %vm472, %v456, %v457
      %v486 = vsel %vm472, %v455, %v456
      %v487 = vsel %vm472, %v454, %v455
      %v488 = vsel %vm472, %v469, %v454
      %v493 = vunpack.c.l.b16 %v271
      %v494 = vunpack.c.l.b16 %v272
      %v495 = vunpack.c.l.b16 %v273
      %v496 = vunpack.c.l.b16 %v274
      %v497 = vpack.c.b16 %v494, %v493
      %v498 = vpack.c.b16 %v496, %v495
      %501 = vmatprep.subr.bf16.mxu0 0
      %502 = vmatpush1.bf16.msra.mxu0 %v497
      %503 = vmatprep.subr.bf16.mxu0 0
      %504 = vmatpush1.bf16.msra.mxu0 %v498
      %505 = vmatprep.subr.bf16.mxu0 0
      %506 = vmatpush1.bf16.msra.mxu0 0
      %507 = vmatprep.subr.bf16.mxu0 0
      %508 = vmatpush1.bf16.msra.mxu0 0
      %509 = vmatprep.subr.bf16.mxu0 0
      %510 = vmatpush1.bf16.msra.mxu0 0
      %511 = vmatprep.subr.bf16.mxu0 0
      %512 = vmatpush1.bf16.msra.mxu0 0
      %513 = vmatprep.subr.bf16.mxu0 0
      %514 = vmatpush1.bf16.msra.mxu0 0
      %515 = vmatprep.subr.bf16.mxu0 0
      %516 = vmatpush1.bf16.msra.mxu0 0
      %517 = vmatprep.subr.bf16.mxu0 0
      %518 = vmatpush1.bf16.msra.mxu0 0
      %519 = vmatprep.subr.bf16.mxu0 0
      %520 = vmatpush1.bf16.msra.mxu0 0
      %521 = vmatprep.subr.bf16.mxu0 0
      %522 = vmatpush1.bf16.msra.mxu0 0
      %523 = vmatprep.subr.bf16.mxu0 0
      %524 = vmatpush1.bf16.msra.mxu0 0
      %525 = vmatprep.subr.bf16.mxu0 0
      %526 = vmatpush1.bf16.msra.mxu0 0
      %527 = vmatprep.subr.bf16.mxu0 0
      %528 = vmatpush1.bf16.msra.mxu0 0
      %529 = vmatprep.subr.bf16.mxu0 0
      %530 = vmatpush1.bf16.msra.mxu0 0
      %531 = vmatprep.subr.bf16.mxu0 0
      %532 = vmatpush1.bf16.msra.mxu0 0
      %533 = vmatprep.mubr.bf16.mxu0 0
      %534 = vmatmul.mubr.bf16.gmra.mrb[0].mxu0 %v334
      %v535 = vpop.f32.mrb[0].mxu0
      %v536 = vadd.f32 %v487, %v535
      %v537 = vpop.f32.mrb[0].mxu0
      %v538 = vpop.f32.mrb[0].mxu0
      %v539 = vadd.f32 %v486, %v538
      %v540 = vpop.f32.mrb[0].mxu0
      %541 = vmatprep.mubr.bf16.mxu0 0
      %542 = vmatmul.mubr.bf16.gmra.mrb[0].mxu0 %v337
      %v543 = vpop.f32.mrb[0].mxu0
      %v544 = vadd.f32 %v485, %v543
      %v545 = vpop.f32.mrb[0].mxu0
      %v546 = vpop.f32.mrb[0].mxu0
      %v547 = vadd.f32 %v484, %v546
      %v548 = vpop.f32.mrb[0].mxu0
      %549 = vmatprep.mubr.bf16.mxu0 0
      %550 = vmatmul.mubr.bf16.gmra.mrb[0].mxu0 %v340
      %v551 = vpop.f32.mrb[0].mxu0
      %v552 = vadd.f32 %v483, %v551
      %v553 = vpop.f32.mrb[0].mxu0
      %v554 = vpop.f32.mrb[0].mxu0
      %v555 = vadd.f32 %v482, %v554
      %v556 = vpop.f32.mrb[0].mxu0
      %557 = vmatprep.mubr.bf16.mxu0 0
      %558 = vmatmul.mubr.bf16.gmra.mrb[0].mxu0 %v343
      %v559 = vpop.f32.mrb[0].mxu0
      %v560 = vadd.f32 %v481, %v559
      %v561 = vpop.f32.mrb[0].mxu0
      %v562 = vpop.f32.mrb[0].mxu0
      %v563 = vadd.f32 %v480, %v562
      %v564 = vpop.f32.mrb[0].mxu0
      %565 = vmatprep.mubr.bf16.mxu0 0
      %566 = vmatmul.mubr.bf16.gmra.mrb[0].mxu0 %v346
      %v567 = vpop.f32.mrb[0].mxu0
      %v568 = vadd.f32 %v479, %v567
      %v569 = vpop.f32.mrb[0].mxu0
      %v570 = vpop.f32.mrb[0].mxu0
      %v571 = vadd.f32 %v478, %v570
      %v572 = vpop.f32.mrb[0].mxu0
      %573 = vmatprep.mubr.bf16.mxu0 0
      %574 = vmatmul.mubr.bf16.gmra.mrb[0].mxu0 %v349
      %v575 = vpop.f32.mrb[0].mxu0
      %v576 = vadd.f32 %v477, %v575
      %v577 = vpop.f32.mrb[0].mxu0
      %v578 = vpop.f32.mrb[0].mxu0
      %v579 = vadd.f32 %v476, %v578
      %v580 = vpop.f32.mrb[0].mxu0
      %581 = vmatprep.mubr.bf16.mxu0 0
      %582 = vmatmul.mubr.bf16.gmra.mrb[0].mxu0 %v352
      %v583 = vpop.f32.mrb[0].mxu0
      %v584 = vadd.f32 %v475, %v583
      %v585 = vpop.f32.mrb[0].mxu0
      %v586 = vpop.f32.mrb[0].mxu0
      %v587 = vadd.f32 %v474, %v586
      %v588 = vpop.f32.mrb[0].mxu0
      %589 = vmatprep.mubr.bf16.mxu0 0
      %590 = vmatmul.mubr.bf16.gmra.mrb[0].mxu0 %v355
      %v591 = vpop.f32.mrb[0].mxu0
      %v592 = vadd.f32 %v473, %v591
      %v593 = vpop.f32.mrb[0].mxu0
      %v594 = vpop.f32.mrb[0].mxu0
      %v595 = vadd.f32 %v488, %v594
      %v596 = vpop.f32.mrb[0].mxu0
      %597 = vdwg.mxu0
      %s598 = scalar_lea.vmem %s1, 32
      %v599 = vld [vmem:[%s598] sm:$0xf]
      %v600 = vld [vmem:[%s598 + $0x4] sm:$0xf]
      %v601 = vld [vmem:[%s598 + $0x8] sm:$0xf]
      %v602 = vld [vmem:[%s598 + $0xc] sm:$0xf]
      %v607 = vunpack.c.l.b16 %v599
      %v608 = vunpack.c.l.b16 %v600
      %v609 = vunpack.c.l.b16 %v601
      %v610 = vunpack.c.l.b16 %v602
      %v611 = vpack.c.b16 %v608, %v607
      %v612 = vpack.c.b16 %v610, %v609
      %615 = vmatprep.subr.bf16.mxu0 0
      %616 = vmatpush1.bf16.msra.mxu0 %v611
      %617 = vmatprep.subr.bf16.mxu0 0
      %618 = vmatpush1.bf16.msra.mxu0 %v612
      %619 = vmatprep.subr.bf16.mxu0 0
      %620 = vmatpush1.bf16.msra.mxu0 0
      %621 = vmatprep.subr.bf16.mxu0 0
      %622 = vmatpush1.bf16.msra.mxu0 0
      %623 = vmatprep.subr.bf16.mxu0 0
      %624 = vmatpush1.bf16.msra.mxu0 0
      %625 = vmatprep.subr.bf16.mxu0 0
      %626 = vmatpush1.bf16.msra.mxu0 0
      %627 = vmatprep.subr.bf16.mxu0 0
      %628 = vmatpush1.bf16.msra.mxu0 0
      %629 = vmatprep.subr.bf16.mxu0 0
      %630 = vmatpush1.bf16.msra.mxu0 0
      %631 = vmatprep.subr.bf16.mxu0 0
      %632 = vmatpush1.bf16.msra.mxu0 0
      %633 = vmatprep.subr.bf16.mxu0 0
      %634 = vmatpush1.bf16.msra.mxu0 0
      %635 = vmatprep.subr.bf16.mxu0 0
      %636 = vmatpush1.bf16.msra.mxu0 0
      %637 = vmatprep.subr.bf16.mxu0 0
      %638 = vmatpush1.bf16.msra.mxu0 0
      %639 = vmatprep.subr.bf16.mxu0 0
      %640 = vmatpush1.bf16.msra.mxu0 0
      %641 = vmatprep.subr.bf16.mxu0 0
      %642 = vmatpush1.bf16.msra.mxu0 0
      %643 = vmatprep.subr.bf16.mxu0 0
      %644 = vmatpush1.bf16.msra.mxu0 0
      %645 = vmatprep.subr.bf16.mxu0 0
      %646 = vmatpush1.bf16.msra.mxu0 0
      %647 = vmatprep.mubr.bf16.mxu0 0
      %648 = vmatmul.mubr.bf16.gmra.mrb[0].mxu0 %v334
      %v649 = vpop.f32.mrb[0].mxu0
      %v650 = vadd.f32 0.0, %v649
      %v651 = vpop.f32.mrb[0].mxu0
      %v652 = vpop.f32.mrb[0].mxu0
      %v653 = vadd.f32 0.0, %v652
      %v654 = vpop.f32.mrb[0].mxu0
      %655 = vmatprep.mubr.bf16.mxu0 0
      %656 = vmatmul.mubr.bf16.gmra.mrb[0].mxu0 %v337
      %v657 = vpop.f32.mrb[0].mxu0
      %v658 = vadd.f32 0.0, %v657
      %v659 = vpop.f32.mrb[0].mxu0
      %v660 = vpop.f32.mrb[0].mxu0
      %v661 = vadd.f32 0.0, %v660
      %v662 = vpop.f32.mrb[0].mxu0
      %663 = vmatprep.mubr.bf16.mxu0 0
      %664 = vmatmul.mubr.bf16.gmra.mrb[0].mxu0 %v340
      %v665 = vpop.f32.mrb[0].mxu0
      %v666 = vadd.f32 0.0, %v665
      %v667 = vpop.f32.mrb[0].mxu0
      %v668 = vpop.f32.mrb[0].mxu0
      %v669 = vadd.f32 0.0, %v668
      %v670 = vpop.f32.mrb[0].mxu0
      %671 = vmatprep.mubr.bf16.mxu0 0
      %672 = vmatmul.mubr.bf16.gmra.mrb[0].mxu0 %v343
      %v673 = vpop.f32.mrb[0].mxu0
      %v674 = vadd.f32 0.0, %v673
      %v675 = vpop.f32.mrb[0].mxu0
      %v676 = vpop.f32.mrb[0].mxu0
      %v677 = vadd.f32 0.0, %v676
      %v678 = vpop.f32.mrb[0].mxu0
      %679 = vmatprep.mubr.bf16.mxu0 0
      %680 = vmatmul.mubr.bf16.gmra.mrb[0].mxu0 %v346
      %v681 = vpop.f32.mrb[0].mxu0
      %v682 = vadd.f32 0.0, %v681
      %v683 = vpop.f32.mrb[0].mxu0
      %v684 = vpop.f32.mrb[0].mxu0
      %v685 = vadd.f32 0.0, %v684
      %v686 = vpop.f32.mrb[0].mxu0
      %687 = vmatprep.mubr.bf16.mxu0 0
      %688 = vmatmul.mubr.bf16.gmra.mrb[0].mxu0 %v349
      %v689 = vpop.f32.mrb[0].mxu0
      %v690 = vadd.f32 0.0, %v689
      %v691 = vpop.f32.mrb[0].mxu0
      %v692 = vpop.f32.mrb[0].mxu0
      %v693 = vadd.f32 0.0, %v692
      %v694 = vpop.f32.mrb[0].mxu0
      %695 = vmatprep.mubr.bf16.mxu0 0
      %696 = vmatmul.mubr.bf16.gmra.mrb[0].mxu0 %v352
      %v697 = vpop.f32.mrb[0].mxu0
      %v698 = vadd.f32 0.0, %v697
      %v699 = vpop.f32.mrb[0].mxu0
      %v700 = vpop.f32.mrb[0].mxu0
      %v701 = vadd.f32 0.0, %v700
      %v702 = vpop.f32.mrb[0].mxu0
      %703 = vmatprep.mubr.bf16.mxu0 0
      %704 = vmatmul.mubr.bf16.gmra.mrb[0].mxu0 %v355
      %v705 = vpop.f32.mrb[0].mxu0
      %v706 = vadd.f32 0.0, %v705
      %v707 = vpop.f32.mrb[0].mxu0
      %v708 = vpop.f32.mrb[0].mxu0
      %v709 = vadd.f32 0.0, %v708
      %v710 = vpop.f32.mrb[0].mxu0
      %711 = vdwg.mxu0
      %v712 = vrot.slane %v650, 2
      %v713 = vrot.slane %v653, 2
      %v714 = vrot.slane %v658, 2
      %v715 = vrot.slane %v661, 2
      %v716 = vrot.slane %v666, 2
      %v717 = vrot.slane %v669, 2
      %v718 = vrot.slane %v674, 2
      %v719 = vrot.slane %v677, 2
      %v720 = vrot.slane %v682, 2
      %v721 = vrot.slane %v685, 2
      %v722 = vrot.slane %v690, 2
      %v723 = vrot.slane %v693, 2
      %v724 = vrot.slane %v698, 2
      %v725 = vrot.slane %v701, 2
      %v726 = vrot.slane %v706, 2
      %v727 = vrot.slane %v709, 2
      %vm728 = vcmp.lt.s32.totalorder %v471, 6
      %v729 = vsel %vm728, %v726, %v727
      %v730 = vsel %vm728, %v725, %v726
      %v731 = vsel %vm728, %v724, %v725
      %v732 = vsel %vm728, %v723, %v724
      %v733 = vsel %vm728, %v722, %v723
      %v734 = vsel %vm728, %v721, %v722
      %v735 = vsel %vm728, %v720, %v721
      %v736 = vsel %vm728, %v719, %v720
      %v737 = vsel %vm728, %v718, %v719
      %v738 = vsel %vm728, %v717, %v718
      %v739 = vsel %vm728, %v716, %v717
      %v740 = vsel %vm728, %v715, %v716
      %v741 = vsel %vm728, %v714, %v715
      %v742 = vsel %vm728, %v713, %v714
      %v743 = vsel %vm728, %v712, %v713
      %v744 = vsel %vm728, %v727, %v712
      %v745 = vadd.f32 %v536, %v743
      %v746 = vadd.f32 %v539, %v742
      %v747 = vadd.f32 %v544, %v741
      %v748 = vadd.f32 %v547, %v740
      %v749 = vadd.f32 %v552, %v739
      %v750 = vadd.f32 %v555, %v738
      %v751 = vadd.f32 %v560, %v737
      %v752 = vadd.f32 %v563, %v736
      %v753 = vadd.f32 %v568, %v735
      %v754 = vadd.f32 %v571, %v734
      %v755 = vadd.f32 %v576, %v733
      %v756 = vadd.f32 %v579, %v732
      %v757 = vadd.f32 %v584, %v731
      %v758 = vadd.f32 %v587, %v730
      %v759 = vadd.f32 %v592, %v729
      %v760 = vadd.f32 %v595, %v744
      %s761 = scalar_lea.vmem %s1, 48
      %v762 = vld [vmem:[%s761] sm:$0xf]
      %v763 = vld [vmem:[%s761 + $0x4] sm:$0xf]
      %v764 = vld [vmem:[%s761 + $0x8] sm:$0xf]
      %v765 = vld [vmem:[%s761 + $0xc] sm:$0xf]
      %v770 = vunpack.c.l.b16 %v762
      %v771 = vunpack.c.l.b16 %v763
      %v772 = vunpack.c.l.b16 %v764
      %v773 = vunpack.c.l.b16 %v765
      %v774 = vpack.c.b16 %v771, %v770
      %v775 = vpack.c.b16 %v773, %v772
      %778 = vmatprep.subr.bf16.mxu0 0
      %779 = vmatpush1.bf16.msra.mxu0 %v774
      %780 = vmatprep.subr.bf16.mxu0 0
      %781 = vmatpush1.bf16.msra.mxu0 %v775
      %782 = vmatprep.subr.bf16.mxu0 0
      %783 = vmatpush1.bf16.msra.mxu0 0
      %784 = vmatprep.subr.bf16.mxu0 0
      %785 = vmatpush1.bf16.msra.mxu0 0
      %786 = vmatprep.subr.bf16.mxu0 0
      %787 = vmatpush1.bf16.msra.mxu0 0
      %788 = vmatprep.subr.bf16.mxu0 0
      %789 = vmatpush1.bf16.msra.mxu0 0
      %790 = vmatprep.subr.bf16.mxu0 0
      %791 = vmatpush1.bf16.msra.mxu0 0
      %792 = vmatprep.subr.bf16.mxu0 0
      %793 = vmatpush1.bf16.msra.mxu0 0
      %794 = vmatprep.subr.bf16.mxu0 0
      %795 = vmatpush1.bf16.msra.mxu0 0
      %796 = vmatprep.subr.bf16.mxu0 0
      %797 = vmatpush1.bf16.msra.mxu0 0
      %798 = vmatprep.subr.bf16.mxu0 0
      %799 = vmatpush1.bf16.msra.mxu0 0
      %800 = vmatprep.subr.bf16.mxu0 0
      %801 = vmatpush1.bf16.msra.mxu0 0
      %802 = vmatprep.subr.bf16.mxu0 0
      %803 = vmatpush1.bf16.msra.mxu0 0
      %804 = vmatprep.subr.bf16.mxu0 0
      %805 = vmatpush1.bf16.msra.mxu0 0
      %806 = vmatprep.subr.bf16.mxu0 0
      %807 = vmatpush1.bf16.msra.mxu0 0
      %808 = vmatprep.subr.bf16.mxu0 0
      %809 = vmatpush1.bf16.msra.mxu0 0
      %810 = vmatprep.mubr.bf16.mxu0 0
      %811 = vmatmul.mubr.bf16.gmra.mrb[0].mxu0 %v334
      %v812 = vpop.f32.mrb[0].mxu0
      %v813 = vadd.f32 0.0, %v812
      %v814 = vpop.f32.mrb[0].mxu0
      %v815 = vpop.f32.mrb[0].mxu0
      %v816 = vadd.f32 0.0, %v815
      %v817 = vpop.f32.mrb[0].mxu0
      %818 = vmatprep.mubr.bf16.mxu0 0
      %819 = vmatmul.mubr.bf16.gmra.mrb[0].mxu0 %v337
      %v820 = vpop.f32.mrb[0].mxu0
      %v821 = vadd.f32 0.0, %v820
      %v822 = vpop.f32.mrb[0].mxu0
      %v823 = vpop.f32.mrb[0].mxu0
      %v824 = vadd.f32 0.0, %v823
      %v825 = vpop.f32.mrb[0].mxu0
      %826 = vmatprep.mubr.bf16.mxu0 0
      %827 = vmatmul.mubr.bf16.gmra.mrb[0].mxu0 %v340
      %v828 = vpop.f32.mrb[0].mxu0
      %v829 = vadd.f32 0.0, %v828
      %v830 = vpop.f32.mrb[0].mxu0
      %v831 = vpop.f32.mrb[0].mxu0
      %v832 = vadd.f32 0.0, %v831
      %v833 = vpop.f32.mrb[0].mxu0
      %834 = vmatprep.mubr.bf16.mxu0 0
      %835 = vmatmul.mubr.bf16.gmra.mrb[0].mxu0 %v343
      %v836 = vpop.f32.mrb[0].mxu0
      %v837 = vadd.f32 0.0, %v836
      %v838 = vpop.f32.mrb[0].mxu0
      %v839 = vpop.f32.mrb[0].mxu0
      %v840 = vadd.f32 0.0, %v839
      %v841 = vpop.f32.mrb[0].mxu0
      %842 = vmatprep.mubr.bf16.mxu0 0
      %843 = vmatmul.mubr.bf16.gmra.mrb[0].mxu0 %v346
      %v844 = vpop.f32.mrb[0].mxu0
      %v845 = vadd.f32 0.0, %v844
      %v846 = vpop.f32.mrb[0].mxu0
      %v847 = vpop.f32.mrb[0].mxu0
      %v848 = vadd.f32 0.0, %v847
      %v849 = vpop.f32.mrb[0].mxu0
      %850 = vmatprep.mubr.bf16.mxu0 0
      %851 = vmatmul.mubr.bf16.gmra.mrb[0].mxu0 %v349
      %v852 = vpop.f32.mrb[0].mxu0
      %v853 = vadd.f32 0.0, %v852
      %v854 = vpop.f32.mrb[0].mxu0
      %v855 = vpop.f32.mrb[0].mxu0
      %v856 = vadd.f32 0.0, %v855
      %v857 = vpop.f32.mrb[0].mxu0
      %858 = vmatprep.mubr.bf16.mxu0 0
      %859 = vmatmul.mubr.bf16.gmra.mrb[0].mxu0 %v352
      %v860 = vpop.f32.mrb[0].mxu0
      %v861 = vadd.f32 0.0, %v860
      %v862 = vpop.f32.mrb[0].mxu0
      %v863 = vpop.f32.mrb[0].mxu0
      %v864 = vadd.f32 0.0, %v863
      %v865 = vpop.f32.mrb[0].mxu0
      %866 = vmatprep.mubr.bf16.mxu0 0
      %867 = vmatmul.mubr.bf16.gmra.mrb[0].mxu0 %v355
      %v868 = vpop.f32.mrb[0].mxu0
      %v869 = vadd.f32 0.0, %v868
      %v870 = vpop.f32.mrb[0].mxu0
      %v871 = vpop.f32.mrb[0].mxu0
      %v872 = vadd.f32 0.0, %v871
      %v873 = vpop.f32.mrb[0].mxu0
      %874 = vdwg.mxu0
      %v875 = vrot.slane %v813, 3
      %v876 = vrot.slane %v816, 3
      %v877 = vrot.slane %v821, 3
      %v878 = vrot.slane %v824, 3
      %v879 = vrot.slane %v829, 3
      %v880 = vrot.slane %v832, 3
      %v881 = vrot.slane %v837, 3
      %v882 = vrot.slane %v840, 3
      %v883 = vrot.slane %v845, 3
      %v884 = vrot.slane %v848, 3
      %v885 = vrot.slane %v853, 3
      %v886 = vrot.slane %v856, 3
      %v887 = vrot.slane %v861, 3
      %v888 = vrot.slane %v864, 3
      %v889 = vrot.slane %v869, 3
      %v890 = vrot.slane %v872, 3
      %vm891 = vcmp.lt.s32.totalorder %v471, 5
      %v892 = vsel %vm891, %v889, %v890
      %v893 = vsel %vm891, %v888, %v889
      %v894 = vsel %vm891, %v887, %v888
      %v895 = vsel %vm891, %v886, %v887
      %v896 = vsel %vm891, %v885, %v886
      %v897 = vsel %vm891, %v884, %v885
      %v898 = vsel %vm891, %v883, %v884
      %v899 = vsel %vm891, %v882, %v883
      %v900 = vsel %vm891, %v881, %v882
      %v901 = vsel %vm891, %v880, %v881
      %v902 = vsel %vm891, %v879, %v880
      %v903 = vsel %vm891, %v878, %v879
      %v904 = vsel %vm891, %v877, %v878
      %v905 = vsel %vm891, %v876, %v877
      %v906 = vsel %vm891, %v875, %v876
      %v907 = vsel %vm891, %v890, %v875
      %v908 = vadd.f32 %v745, %v906
      %v909 = vadd.f32 %v746, %v905
      %v910 = vadd.f32 %v747, %v904
      %v911 = vadd.f32 %v748, %v903
      %v912 = vadd.f32 %v749, %v902
      %v913 = vadd.f32 %v750, %v901
      %v914 = vadd.f32 %v751, %v900
      %v915 = vadd.f32 %v752, %v899
      %v916 = vadd.f32 %v753, %v898
      %v917 = vadd.f32 %v754, %v897
      %v918 = vadd.f32 %v755, %v896
      %v919 = vadd.f32 %v756, %v895
      %v920 = vadd.f32 %v757, %v894
      %v921 = vadd.f32 %v758, %v893
      %v922 = vadd.f32 %v759, %v892
      %v923 = vadd.f32 %v760, %v907
      %s924 = scalar_lea.vmem %s1, 64
      %v925 = vld [vmem:[%s924] sm:$0xf]
      %v926 = vld [vmem:[%s924 + $0x4] sm:$0xf]
      %v927 = vld [vmem:[%s924 + $0x8] sm:$0xf]
      %v928 = vld [vmem:[%s924 + $0xc] sm:$0xf]
      %v933 = vunpack.c.l.b16 %v925
      %v934 = vunpack.c.l.b16 %v926
      %v935 = vunpack.c.l.b16 %v927
      %v936 = vunpack.c.l.b16 %v928
      %v937 = vpack.c.b16 %v934, %v933
      %v938 = vpack.c.b16 %v936, %v935
      %941 = vmatprep.subr.bf16.mxu0 0
      %942 = vmatpush1.bf16.msra.mxu0 %v937
      %943 = vmatprep.subr.bf16.mxu0 0
      %944 = vmatpush1.bf16.msra.mxu0 %v938
      %945 = vmatprep.subr.bf16.mxu0 0
      %946 = vmatpush1.bf16.msra.mxu0 0
      %947 = vmatprep.subr.bf16.mxu0 0
      %948 = vmatpush1.bf16.msra.mxu0 0
      %949 = vmatprep.subr.bf16.mxu0 0
      %950 = vmatpush1.bf16.msra.mxu0 0
      %951 = vmatprep.subr.bf16.mxu0 0
      %952 = vmatpush1.bf16.msra.mxu0 0
      %953 = vmatprep.subr.bf16.mxu0 0
      %954 = vmatpush1.bf16.msra.mxu0 0
      %955 = vmatprep.subr.bf16.mxu0 0
      %956 = vmatpush1.bf16.msra.mxu0 0
      %957 = vmatprep.subr.bf16.mxu0 0
      %958 = vmatpush1.bf16.msra.mxu0 0
      %959 = vmatprep.subr.bf16.mxu0 0
      %960 = vmatpush1.bf16.msra.mxu0 0
      %961 = vmatprep.subr.bf16.mxu0 0
      %962 = vmatpush1.bf16.msra.mxu0 0
      %963 = vmatprep.subr.bf16.mxu0 0
      %964 = vmatpush1.bf16.msra.mxu0 0
      %965 = vmatprep.subr.bf16.mxu0 0
      %966 = vmatpush1.bf16.msra.mxu0 0
      %967 = vmatprep.subr.bf16.mxu0 0
      %968 = vmatpush1.bf16.msra.mxu0 0
      %969 = vmatprep.subr.bf16.mxu0 0
      %970 = vmatpush1.bf16.msra.mxu0 0
      %971 = vmatprep.subr.bf16.mxu0 0
      %972 = vmatpush1.bf16.msra.mxu0 0
      %973 = vmatprep.mubr.bf16.mxu0 0
      %974 = vmatmul.mubr.bf16.gmra.mrb[0].mxu0 %v334
      %v975 = vpop.f32.mrb[0].mxu0
      %v976 = vadd.f32 0.0, %v975
      %v977 = vpop.f32.mrb[0].mxu0
      %v978 = vpop.f32.mrb[0].mxu0
      %v979 = vadd.f32 0.0, %v978
      %v980 = vpop.f32.mrb[0].mxu0
      %981 = vmatprep.mubr.bf16.mxu0 0
      %982 = vmatmul.mubr.bf16.gmra.mrb[0].mxu0 %v337
      %v983 = vpop.f32.mrb[0].mxu0
      %v984 = vadd.f32 0.0, %v983
      %v985 = vpop.f32.mrb[0].mxu0
      %v986 = vpop.f32.mrb[0].mxu0
      %v987 = vadd.f32 0.0, %v986
      %v988 = vpop.f32.mrb[0].mxu0
      %989 = vmatprep.mubr.bf16.mxu0 0
      %990 = vmatmul.mubr.bf16.gmra.mrb[0].mxu0 %v340
      %v991 = vpop.f32.mrb[0].mxu0
      %v992 = vadd.f32 0.0, %v991
      %v993 = vpop.f32.mrb[0].mxu0
      %v994 = vpop.f32.mrb[0].mxu0
      %v995 = vadd.f32 0.0, %v994
      %v996 = vpop.f32.mrb[0].mxu0
      %997 = vmatprep.mubr.bf16.mxu0 0
      %998 = vmatmul.mubr.bf16.gmra.mrb[0].mxu0 %v343
      %v999 = vpop.f32.mrb[0].mxu0
      %v1000 = vadd.f32 0.0, %v999
      %v1001 = vpop.f32.mrb[0].mxu0
      %v1002 = vpop.f32.mrb[0].mxu0
      %v1003 = vadd.f32 0.0, %v1002
      %v1004 = vpop.f32.mrb[0].mxu0
      %1005 = vmatprep.mubr.bf16.mxu0 0
      %1006 = vmatmul.mubr.bf16.gmra.mrb[0].mxu0 %v346
      %v1007 = vpop.f32.mrb[0].mxu0
      %v1008 = vadd.f32 0.0, %v1007
      %v1009 = vpop.f32.mrb[0].mxu0
      %v1010 = vpop.f32.mrb[0].mxu0
      %v1011 = vadd.f32 0.0, %v1010
      %v1012 = vpop.f32.mrb[0].mxu0
      %1013 = vmatprep.mubr.bf16.mxu0 0
      %1014 = vmatmul.mubr.bf16.gmra.mrb[0].mxu0 %v349
      %v1015 = vpop.f32.mrb[0].mxu0
      %v1016 = vadd.f32 0.0, %v1015
      %v1017 = vpop.f32.mrb[0].mxu0
      %v1018 = vpop.f32.mrb[0].mxu0
      %v1019 = vadd.f32 0.0, %v1018
      %v1020 = vpop.f32.mrb[0].mxu0
      %1021 = vmatprep.mubr.bf16.mxu0 0
      %1022 = vmatmul.mubr.bf16.gmra.mrb[0].mxu0 %v352
      %v1023 = vpop.f32.mrb[0].mxu0
      %v1024 = vadd.f32 0.0, %v1023
      %v1025 = vpop.f32.mrb[0].mxu0
      %v1026 = vpop.f32.mrb[0].mxu0
      %v1027 = vadd.f32 0.0, %v1026
      %v1028 = vpop.f32.mrb[0].mxu0
      %1029 = vmatprep.mubr.bf16.mxu0 0
      %1030 = vmatmul.mubr.bf16.gmra.mrb[0].mxu0 %v355
      %v1031 = vpop.f32.mrb[0].mxu0
      %v1032 = vadd.f32 0.0, %v1031
      %v1033 = vpop.f32.mrb[0].mxu0
      %v1034 = vpop.f32.mrb[0].mxu0
      %v1035 = vadd.f32 0.0, %v1034
      %v1036 = vpop.f32.mrb[0].mxu0
      %1037 = vdwg.mxu0
      %v1038 = vrot.slane %v976, 4
      %v1039 = vrot.slane %v979, 4
      %v1040 = vrot.slane %v984, 4
      %v1041 = vrot.slane %v987, 4
      %v1042 = vrot.slane %v992, 4
      %v1043 = vrot.slane %v995, 4
      %v1044 = vrot.slane %v1000, 4
      %v1045 = vrot.slane %v1003, 4
      %v1046 = vrot.slane %v1008, 4
      %v1047 = vrot.slane %v1011, 4
      %v1048 = vrot.slane %v1016, 4
      %v1049 = vrot.slane %v1019, 4
      %v1050 = vrot.slane %v1024, 4
      %v1051 = vrot.slane %v1027, 4
      %v1052 = vrot.slane %v1032, 4
      %v1053 = vrot.slane %v1035, 4
      %vm1054 = vcmp.lt.s32.totalorder %v471, 4
      %v1055 = vsel %vm1054, %v1052, %v1053
      %v1056 = vsel %vm1054, %v1051, %v1052
      %v1057 = vsel %vm1054, %v1050, %v1051
      %v1058 = vsel %vm1054, %v1049, %v1050
      %v1059 = vsel %vm1054, %v1048, %v1049
      %v1060 = vsel %vm1054, %v1047, %v1048
      %v1061 = vsel %vm1054, %v1046, %v1047
      %v1062 = vsel %vm1054, %v1045, %v1046
      %v1063 = vsel %vm1054, %v1044, %v1045
      %v1064 = vsel %vm1054, %v1043, %v1044
      %v1065 = vsel %vm1054, %v1042, %v1043
      %v1066 = vsel %vm1054, %v1041, %v1042
      %v1067 = vsel %vm1054, %v1040, %v1041
      %v1068 = vsel %vm1054, %v1039, %v1040
      %v1069 = vsel %vm1054, %v1038, %v1039
      %v1070 = vsel %vm1054, %v1053, %v1038
      %v1071 = vadd.f32 %v908, %v1069
      %v1072 = vadd.f32 %v909, %v1068
      %v1073 = vadd.f32 %v910, %v1067
      %v1074 = vadd.f32 %v911, %v1066
      %v1075 = vadd.f32 %v912, %v1065
      %v1076 = vadd.f32 %v913, %v1064
      %v1077 = vadd.f32 %v914, %v1063
      %v1078 = vadd.f32 %v915, %v1062
      %v1079 = vadd.f32 %v916, %v1061
      %v1080 = vadd.f32 %v917, %v1060
      %v1081 = vadd.f32 %v918, %v1059
      %v1082 = vadd.f32 %v919, %v1058
      %v1083 = vadd.f32 %v920, %v1057
      %v1084 = vadd.f32 %v921, %v1056
      %v1085 = vadd.f32 %v922, %v1055
      %v1086 = vadd.f32 %v923, %v1070
      %v1087 = vadd.s32 %v471, 8
      %v1088 = vld [vmem:[%s2] sm:$0x1]
      %v1089 = vlaneseq
      %v1090 = vshrl.u32 %v1089, 7
      %v1091 = vsub.s32 0, %v1090
      %v1092 = vrot.slane %v1088, %v1091
      %vm1093 = vcmp.lt.s32.totalorder %v471, %v1092
      %vm1094 = vcmp.lt.s32.totalorder %v1087, %v1092
      %v1095 = vsel %vm1093, 0.0, -1e+30
      %v1096 = vsel %vm1094, 0.0, -1e+30
      %v1097 = vadd.f32 %v1071, %v1095
      %v1098 = vadd.f32 %v1072, %v1096
      %v1099 = vadd.f32 %v1073, %v1095
      %v1100 = vadd.f32 %v1074, %v1096
      %v1101 = vadd.f32 %v1075, %v1095
      %v1102 = vadd.f32 %v1076, %v1096
      %v1103 = vadd.f32 %v1077, %v1095
      %v1104 = vadd.f32 %v1078, %v1096
      %v1105 = vadd.f32 %v1079, %v1095
      %v1106 = vadd.f32 %v1080, %v1096
      %v1107 = vadd.f32 %v1081, %v1095
      %v1108 = vadd.f32 %v1082, %v1096
      %v1109 = vadd.f32 %v1083, %v1095
      %v1110 = vadd.f32 %v1084, %v1096
      %v1111 = vadd.f32 %v1085, %v1095
      %v1112 = vadd.f32 %v1086, %v1096
      %v1113 = vmax.f32 %v1097, %v1098
      %v1114 = vrot.slane %v1113, 4
      %v1115 = vmax.f32 %v1113, %v1114
      %v1116 = vrot.slane %v1115, 2
      %v1117 = vmax.f32 %v1115, %v1116
      %v1118 = vrot.slane %v1117, 1
      %v1119 = vmax.f32 %v1117, %v1118
      %v1120 = vmax.f32 %v1099, %v1100
      %v1121 = vrot.slane %v1120, 4
      %v1122 = vmax.f32 %v1120, %v1121
      %v1123 = vrot.slane %v1122, 2
      %v1124 = vmax.f32 %v1122, %v1123
      %v1125 = vrot.slane %v1124, 1
      %v1126 = vmax.f32 %v1124, %v1125
      %v1127 = vmax.f32 %v1101, %v1102
      %v1128 = vrot.slane %v1127, 4
      %v1129 = vmax.f32 %v1127, %v1128
      %v1130 = vrot.slane %v1129, 2
      %v1131 = vmax.f32 %v1129, %v1130
      %v1132 = vrot.slane %v1131, 1
      %v1133 = vmax.f32 %v1131, %v1132
      %v1134 = vmax.f32 %v1103, %v1104
      %v1135 = vrot.slane %v1134, 4
      %v1136 = vmax.f32 %v1134, %v1135
      %v1137 = vrot.slane %v1136, 2
      %v1138 = vmax.f32 %v1136, %v1137
      %v1139 = vrot.slane %v1138, 1
      %v1140 = vmax.f32 %v1138, %v1139
      %v1141 = vmax.f32 %v1105, %v1106
      %v1142 = vrot.slane %v1141, 4
      %v1143 = vmax.f32 %v1141, %v1142
      %v1144 = vrot.slane %v1143, 2
      %v1145 = vmax.f32 %v1143, %v1144
      %v1146 = vrot.slane %v1145, 1
      %v1147 = vmax.f32 %v1145, %v1146
      %v1148 = vmax.f32 %v1107, %v1108
      %v1149 = vrot.slane %v1148, 4
      %v1150 = vmax.f32 %v1148, %v1149
      %v1151 = vrot.slane %v1150, 2
      %v1152 = vmax.f32 %v1150, %v1151
      %v1153 = vrot.slane %v1152, 1
      %v1154 = vmax.f32 %v1152, %v1153
      %v1155 = vmax.f32 %v1109, %v1110
      %v1156 = vrot.slane %v1155, 4
      %v1157 = vmax.f32 %v1155, %v1156
      %v1158 = vrot.slane %v1157, 2
      %v1159 = vmax.f32 %v1157, %v1158
      %v1160 = vrot.slane %v1159, 1
      %v1161 = vmax.f32 %v1159, %v1160
      %v1162 = vmax.f32 %v1111, %v1112
      %v1163 = vrot.slane %v1162, 4
      %v1164 = vmax.f32 %v1162, %v1163
      %v1165 = vrot.slane %v1164, 2
      %v1166 = vmax.f32 %v1164, %v1165
      %v1167 = vrot.slane %v1166, 1
      %v1168 = vmax.f32 %v1166, %v1167
      %v1169 = vld [vmem:[%s3] sm:$0x1]
      %v1171 = vlaneseq
      %v1172 = vshrl.u32 %v1171, 7
      %v1173 = vsub.s32 0, %v1172
      %v1174 = vrot.slane %v1169, %v1173
      %v1176 = vadd.f32 %v1119, %v1174
      %v1177 = vadd.f32 %v1126, %v1174
      %v1178 = vadd.f32 %v1133, %v1174
      %v1179 = vadd.f32 %v1140, %v1174
      %v1180 = vadd.f32 %v1147, %v1174
      %v1181 = vadd.f32 %v1154, %v1174
      %v1182 = vadd.f32 %v1161, %v1174
      %v1183 = vadd.f32 %v1168, %v1174
      %v1184 = vmax.f32 %v1176, 0.0
      %v1185 = vmax.f32 %v1177, 0.0
      %v1186 = vmax.f32 %v1178, 0.0
      %v1187 = vmax.f32 %v1179, 0.0
      %v1188 = vmax.f32 %v1180, 0.0
      %v1189 = vmax.f32 %v1181, 0.0
      %v1190 = vmax.f32 %v1182, 0.0
      %v1191 = vmax.f32 %v1183, 0.0
      %v1192 = vld [vmem:[%s4] sm:$0x1]
      %v1194 = vlaneseq
      %v1195 = vshrl.u32 %v1194, 7
      %v1196 = vsub.s32 0, %v1195
      %v1197 = vrot.slane %v1192, %v1196
      %v1199 = vmul.f32 %v1184, %v1197
      %v1200 = vmul.f32 %v1185, %v1197
      %v1201 = vmul.f32 %v1186, %v1197
      %v1202 = vmul.f32 %v1187, %v1197
      %v1203 = vmul.f32 %v1188, %v1197
      %v1204 = vmul.f32 %v1189, %v1197
      %v1205 = vmul.f32 %v1190, %v1197
      %v1206 = vmul.f32 %v1191, %v1197
      %v1215 = vrot.slane %v1200, 7
      %vm1216 = vcmask 1041409
      %v1217 = vsel %vm1216, %v1215, %v1199
      %v1218 = vrot.slane %v1201, 6
      %vm1219 = vcmask 1042434
      %v1220 = vsel %vm1219, %v1218, %v1217
      %v1221 = vrot.slane %v1202, 5
      %vm1222 = vcmask 1043459
      %v1223 = vsel %vm1222, %v1221, %v1220
      %v1224 = vrot.slane %v1203, 4
      %vm1225 = vcmask 1044484
      %v1226 = vsel %vm1225, %v1224, %v1223
      %v1227 = vrot.slane %v1204, 3
      %vm1228 = vcmask 1045509
      %v1229 = vsel %vm1228, %v1227, %v1226
      %v1230 = vrot.slane %v1205, 2
      %vm1231 = vcmask 1046534
      %v1232 = vsel %vm1231, %v1230, %v1229
      %v1233 = vrot.slane %v1206, 1
      %vm1234 = vcmask 1047559
      %v1235 = vsel %vm1234, %v1233, %v1232
      %1237 = vadd.xlane.f32.xlu0 %v1235
      %v1238 = vpop.xlane.xlu0 %1237
      %v1239 = vld [vmem:[#allocation2] sm:$0x1]
      %v1241 = vlaneseq
      %v1242 = vshrl.u32 %v1241, 7
      %v1243 = vsub.s32 0, %v1242
      %v1244 = vrot.slane %v1239, %v1243
      %v1246 = vadd.f32 %v1238, %v1244
      %v1247 = vxor.u32 %v1246, 2147483648
      %v1248 = vmul.f32 %v1247, 1.442695
      %v1249 = vpow.pop %v1248
      %v1250 = vadd.f32 %v1249, 1.0
      %v1251 = vrcp.pop %v1250
      %v1252 = vmul.f32 1.0, %v1251
      %vm1253 = vcmask 7168
      %1254 = vst.msk [vmem:[%s253] sm:$0xff] %vm1253, %v1252
      %p1255 = scmp.lt.s32.totalorder %s19, 1
      %s1256 = scalar_select %p1255, %s19, 1
      %s1257 = smul.addr %s1256, 8
      %s1258 = scalar_lea.vmem %s6, %s1257
      // Predicated region
      $region45: #{tpu_custom_call.1} parent=43 // pred_check
        %p1259 = pneg %p168
      $region46: #{tpu_custom_call.1} parent=43 // pred_check_branch
        %1261 = sbr.rel (%p1259) target = $region48
      $region47: #{tpu_custom_call.1} parent=43 // pred_region
        _
      $region48: #{tpu_custom_call.1} parent=43 // pred_fallthru
        _
    $region44: #{tpu_custom_call.1} parent=5 // pred_fallthru
      _
    %p1262 = scmp.le.s32.totalorder 2, %s14
    // Predicated region
    $region49: #{tpu_custom_call.1} parent=5 // pred_check
      %p1263 = pneg %p1262
    $region50: #{tpu_custom_call.1} parent=5 // pred_check_branch
      %1265 = sbr.rel (%p1263) target = $region52
    $region51: #{tpu_custom_call.1} parent=5 // pred_region
      %s1266 = ssub.s32 %s14, 2
      // Predicated region
      $region53: #{tpu_custom_call.1} parent=51 // pred_check
        %p1267 = pneg %p174
      $region54: #{tpu_custom_call.1} parent=51 // pred_check_branch
        %1269 = sbr.rel (%p1267) target = $region56
      $region55: #{tpu_custom_call.1} parent=51 // pred_region
        %p1270 = scmp.lt.s32.totalorder %s20, 1
        %s1271 = scalar_select %p1270, %s20, 1
        %s1272 = smul.addr %s1271, 8
        %s1273 = scalar_lea.vmem %s6, %s1272
      $region56: #{tpu_custom_call.1} parent=51 // pred_fallthru
        _
    $region52: #{tpu_custom_call.1} parent=5 // pred_fallthru
      _
  $region6: #{tpu_custom_call.1} parent=0 // loop_footer
    %s18 = sadd.s32 1, %s14
  $region7: #{tpu_custom_call.1} parent=0 // loop_footer_branch
    %13 = sbr.rel target = $region3
  $region8: #{tpu_custom_call.1} parent=0 // loop_exit
    _

</llo_original>
